<compile_context>
chip_gen: v5e
topology: v5e:2x2
jax: 0.10.0
libtpu: 0.0.40
codegen_flags: <defaults>
</compile_context>

<pallas_src>
import jax
import jax.numpy as jnp
from jax.experimental import pallas as pl
from jax.experimental.pallas import tpu as pltpu


def mlp_kernel(x_ref, w1_ref, b1_ref, w2_ref, b2_ref, w3_ref, b3_ref, o_ref):
    # Layer 1: Linear (MXU, f32 accumulate) + bias/ReLU in f32 on the VPU.
    h = jnp.dot(x_ref[...], w1_ref[...], preferred_element_type=jnp.float32)
    h = jnp.maximum(h + b1_ref[...], 0.0)
    # Layer 2
    h = jnp.dot(h, w2_ref[...], preferred_element_type=jnp.float32)
    h = jnp.maximum(h + b2_ref[...], 0.0)
    # Output layer: unpadded logits (block last dim == full n_out, no lane padding).
    out = jnp.dot(h, w3_ref[...], preferred_element_type=jnp.float32)
    o_ref[...] = (out + b3_ref[...]).astype(o_ref.dtype)


def _round_up(x, m):
    return (x + m - 1) // m * m


def net_forward(x, params, *, block_b=2048):
    """Pallas forward pass of Net (MLP branch).

    x: (B, n_inputs) float32.  Returns (B, n_outputs) float32 logits.
    """
    w1, b1, w2, b2, w3, b3 = params
    B, n_in = x.shape
    nh1 = w1.shape[1]
    nh2 = w2.shape[1]
    n_out = w3.shape[1]

    # Batch tile: as large as possible (amortise per-step overhead), multiple of 8
    # sublanes, and clamped so the grid has >= 2 steps (second v7x TC gets work).
    # No wrapper-side padding of x: grid uses cdiv and Pallas handles the ragged
    # final block (padded rows only produce output rows outside [0, B)).
    half = _round_up(pl.cdiv(B, 2), 8)
    tb = max(8, min(_round_up(block_b, 8), half))
    grid = (pl.cdiv(B, tb),)

    flops = 2 * B * (n_in * nh1 + nh1 * nh2 + nh2 * n_out)
    bytes_accessed = (
        B * n_in * x.dtype.itemsize                          # x in
        + (n_in * nh1 + nh1 * nh2 + nh2 * n_out) * 4         # weights (f32)
        + (nh1 + nh2 + n_out) * 4                            # biases (f32)
        + B * n_out * 4                                       # logits out (f32, unpadded)
    )

    return pl.pallas_call(
        mlp_kernel,
        out_shape=jax.ShapeDtypeStruct((B, n_out), jnp.float32),
        grid=grid,
        in_specs=[
            pl.BlockSpec((tb, n_in), lambda i: (i, 0)),   # x: streamed per batch tile
            pl.BlockSpec(w1.shape, lambda i: (0, 0)),     # weights/biases: pinned in VMEM
            pl.BlockSpec(b1.shape, lambda i: (0, 0)),
            pl.BlockSpec(w2.shape, lambda i: (0, 0)),
            pl.BlockSpec(b2.shape, lambda i: (0, 0)),
            pl.BlockSpec(w3.shape, lambda i: (0, 0)),
            pl.BlockSpec(b3.shape, lambda i: (0, 0)),
        ],
        out_specs=pl.BlockSpec((tb, n_out), lambda i: (i, 0)),
        compiler_params=pltpu.CompilerParams(
            dimension_semantics=("parallel",),        # batch tiles shard across TCs on v7x
            vmem_limit_bytes=32 * 1024 * 1024,        # far above the <1 MiB actually used
        ),
        cost_estimate=pl.CostEstimate(
            flops=flops, transcendentals=0, bytes_accessed=bytes_accessed),
    )(x, w1, b1, w2, b2, w3, b3)


def init_params(key, n_inputs, n_hiddens, n_layers, n_outputs):
    """Deterministic init matching MLP([n_inputs] + [nh]*n_layers + [n_outputs]) shapes."""
    sizes = [n_inputs] + [n_hiddens] * n_layers + [n_outputs]
    assert n_layers == 2, "this script instantiates the n_layers=2 configuration"
    params = []
    for i in range(len(sizes) - 1):
        key, kw, kb = jax.random.split(key, 3)
        fan_in = sizes[i]
        bound = 1.0 / jnp.sqrt(fan_in)
        # stored as (in, out) == PyTorch weight.T, so the kernel does x @ W + b
        w = jax.random.uniform(kw, (sizes[i], sizes[i + 1]), jnp.float32, -bound, bound)
        b = jax.random.uniform(kb, (1, sizes[i + 1]), jnp.float32, -bound, bound)
        params.extend([w, b])
    return tuple(params)


def reference_forward(x, params):
    (w1, b1, w2, b2, w3, b3) = params
    hp = jax.lax.Precision.HIGHEST
    h = jnp.maximum(jnp.dot(x, w1, precision=hp) + b1, 0.0)
    h = jnp.maximum(jnp.dot(h, w2, precision=hp) + b2, 0.0)
    return jnp.dot(h, w3, precision=hp) + b3


if __name__ == "__main__":
    # Small shapes consistent with the module: n_layers=2, n_hiddens=32, 16 classes.
    # B=200 exercises the >=2-step batch grid and the ragged last block (200 % 104 != 0).
    B, n_inputs, n_hiddens, n_layers, n_outputs = 200, 32, 32, 2, 16

    key = jax.random.PRNGKey(0)
    kx, kp = jax.random.split(key)
    x = jax.random.normal(kx, (B, n_inputs), jnp.float32)
    params = init_params(kp, n_inputs, n_hiddens, n_layers, n_outputs)

    out = net_forward(x, params)
    out = jax.block_until_ready(out)

    ref = reference_forward(x, params)
    assert out.shape == (B, n_outputs)
    # Tolerance covers MXU multi-pass f32 rounding vs XLA HIGHEST-precision matmul.
    assert jnp.allclose(out, ref, atol=1e-3, rtol=1e-3), "mismatch vs reference"

    print("KERNEL_OK")
</pallas_src>

<mosaic_0001>
module attributes {stable_mosaic.version = 11 : i64} {
  func.func @mlp_kernel(%arg0: i32, %arg1: memref<104x32xf32, #tpu.memory_space<vmem>>, %arg2: memref<32x32xf32, #tpu.memory_space<vmem>>, %arg3: memref<1x32xf32, #tpu.memory_space<vmem>>, %arg4: memref<32x32xf32, #tpu.memory_space<vmem>>, %arg5: memref<1x32xf32, #tpu.memory_space<vmem>>, %arg6: memref<32x16xf32, #tpu.memory_space<vmem>>, %arg7: memref<1x16xf32, #tpu.memory_space<vmem>>, %arg8: memref<104x16xf32, #tpu.memory_space<vmem>>) attributes {dimension_semantics = [#tpu.dimension_semantics<parallel>], iteration_bounds = array<i64: 2>, scalar_prefetch = 0 : i64, scratch_operands = 0 : i64, tpu.core_type = #tpu.core_type<tc>, window_params = [{transform_indices = @transform_0, window_bounds = array<i64: 104, 32>}, {pipeline_mode = #tpu.pipeline_mode<synchronous>, transform_indices = @transform_1, window_bounds = array<i64: 32, 32>}, {pipeline_mode = #tpu.pipeline_mode<synchronous>, transform_indices = @transform_2, window_bounds = array<i64: 1, 32>}, {pipeline_mode = #tpu.pipeline_mode<synchronous>, transform_indices = @transform_3, window_bounds = array<i64: 32, 32>}, {pipeline_mode = #tpu.pipeline_mode<synchronous>, transform_indices = @transform_4, window_bounds = array<i64: 1, 32>}, {pipeline_mode = #tpu.pipeline_mode<synchronous>, transform_indices = @transform_5, window_bounds = array<i64: 32, 16>}, {pipeline_mode = #tpu.pipeline_mode<synchronous>, transform_indices = @transform_6, window_bounds = array<i64: 1, 16>}, {transform_indices = @transform_7, window_bounds = array<i64: 104, 16>}]} {
    %c0 = arith.constant 0 : index
    %c0_0 = arith.constant 0 : index
    %0 = vector.load %arg1[%c0, %c0_0] : memref<104x32xf32, #tpu.memory_space<vmem>>, vector<104x32xf32>
    %c0_1 = arith.constant 0 : index
    %c0_2 = arith.constant 0 : index
    %1 = vector.load %arg2[%c0_1, %c0_2] : memref<32x32xf32, #tpu.memory_space<vmem>>, vector<32x32xf32>
    %cst = arith.constant dense<0.000000e+00> : vector<104x32xf32>
    %2 = tpu.matmul %0, %1, %cst {dimension_numbers = #tpu.dot_dimension_numbers<[1], [0], [0], [1], [0, 0, 1, 1], [], []>} : vector<104x32xf32>, vector<32x32xf32>, vector<104x32xf32> -> vector<104x32xf32>
    %c0_3 = arith.constant 0 : index
    %c0_4 = arith.constant 0 : index
    %3 = vector.load %arg3[%c0_3, %c0_4] : memref<1x32xf32, #tpu.memory_space<vmem>>, vector<1x32xf32>
    %4 = vector.broadcast %3 : vector<1x32xf32> to vector<104x32xf32>
    %5 = arith.addf %2, %4 : vector<104x32xf32>
    %cst_5 = arith.constant 0.000000e+00 : f32
    %6 = vector.broadcast %cst_5 : f32 to vector<104x32xf32>
    %7 = arith.maximumf %5, %6 : vector<104x32xf32>
    %c0_6 = arith.constant 0 : index
    %c0_7 = arith.constant 0 : index
    %8 = vector.load %arg4[%c0_6, %c0_7] : memref<32x32xf32, #tpu.memory_space<vmem>>, vector<32x32xf32>
    %cst_8 = arith.constant dense<0.000000e+00> : vector<104x32xf32>
    %9 = tpu.matmul %7, %8, %cst_8 {dimension_numbers = #tpu.dot_dimension_numbers<[1], [0], [0], [1], [0, 0, 1, 1], [], []>} : vector<104x32xf32>, vector<32x32xf32>, vector<104x32xf32> -> vector<104x32xf32>
    %c0_9 = arith.constant 0 : index
    %c0_10 = arith.constant 0 : index
    %10 = vector.load %arg5[%c0_9, %c0_10] : memref<1x32xf32, #tpu.memory_space<vmem>>, vector<1x32xf32>
    %11 = vector.broadcast %10 : vector<1x32xf32> to vector<104x32xf32>
    %12 = arith.addf %9, %11 : vector<104x32xf32>
    %cst_11 = arith.constant 0.000000e+00 : f32
    %13 = vector.broadcast %cst_11 : f32 to vector<104x32xf32>
    %14 = arith.maximumf %12, %13 : vector<104x32xf32>
    %c0_12 = arith.constant 0 : index
    %c0_13 = arith.constant 0 : index
    %15 = vector.load %arg6[%c0_12, %c0_13] : memref<32x16xf32, #tpu.memory_space<vmem>>, vector<32x16xf32>
    %cst_14 = arith.constant dense<0.000000e+00> : vector<104x16xf32>
    %16 = tpu.matmul %14, %15, %cst_14 {dimension_numbers = #tpu.dot_dimension_numbers<[1], [0], [0], [1], [0, 0, 1, 1], [], []>} : vector<104x32xf32>, vector<32x16xf32>, vector<104x16xf32> -> vector<104x16xf32>
    %c0_15 = arith.constant 0 : index
    %c0_16 = arith.constant 0 : index
    %17 = vector.load %arg7[%c0_15, %c0_16] : memref<1x16xf32, #tpu.memory_space<vmem>>, vector<1x16xf32>
    %18 = vector.broadcast %17 : vector<1x16xf32> to vector<104x16xf32>
    %19 = arith.addf %16, %18 : vector<104x16xf32>
    %c0_17 = arith.constant 0 : index
    %c0_18 = arith.constant 0 : index
    %20 = vector.load %arg8[%c0_17, %c0_18] : memref<104x16xf32, #tpu.memory_space<vmem>>, vector<104x16xf32>
    tpu.vector_store %arg8[%c0_17, %c0_18], %19 {strides = array<i32>} : memref<104x16xf32, #tpu.memory_space<vmem>>, vector<104x16xf32>,
    return
  }
  func.func @transform_0(%arg0: i32) -> (i32, i32) {
    %c0_i32 = arith.constant 0 : i32
    %c0_i32_0 = arith.constant 0 : i32
    return %arg0, %c0_i32 : i32, i32
  }
  func.func @transform_1(%arg0: i32) -> (i32, i32) {
    %c0_i32 = arith.constant 0 : i32
    %c0_i32_0 = arith.constant 0 : i32
    %c0_i32_1 = arith.constant 0 : i32
    return %c0_i32, %c0_i32_0 : i32, i32
  }
  func.func @transform_2(%arg0: i32) -> (i32, i32) {
    %c0_i32 = arith.constant 0 : i32
    %c0_i32_0 = arith.constant 0 : i32
    %c0_i32_1 = arith.constant 0 : i32
    return %c0_i32, %c0_i32_0 : i32, i32
  }
  func.func @transform_3(%arg0: i32) -> (i32, i32) {
    %c0_i32 = arith.constant 0 : i32
    %c0_i32_0 = arith.constant 0 : i32
    %c0_i32_1 = arith.constant 0 : i32
    return %c0_i32, %c0_i32_0 : i32, i32
  }
  func.func @transform_4(%arg0: i32) -> (i32, i32) {
    %c0_i32 = arith.constant 0 : i32
    %c0_i32_0 = arith.constant 0 : i32
    %c0_i32_1 = arith.constant 0 : i32
    return %c0_i32, %c0_i32_0 : i32, i32
  }
  func.func @transform_5(%arg0: i32) -> (i32, i32) {
    %c0_i32 = arith.constant 0 : i32
    %c0_i32_0 = arith.constant 0 : i32
    %c0_i32_1 = arith.constant 0 : i32
    return %c0_i32, %c0_i32_0 : i32, i32
  }
  func.func @transform_6(%arg0: i32) -> (i32, i32) {
    %c0_i32 = arith.constant 0 : i32
    %c0_i32_0 = arith.constant 0 : i32
    %c0_i32_1 = arith.constant 0 : i32
    return %c0_i32, %c0_i32_0 : i32, i32
  }
  func.func @transform_7(%arg0: i32) -> (i32, i32) {
    %c0_i32 = arith.constant 0 : i32
    %c0_i32_0 = arith.constant 0 : i32
    return %arg0, %c0_i32 : i32, i32
  }
}

</mosaic_0001>

<llo_original>
// kernel: tpu_custom_call.1
$region0: #{tpu_custom_call.1}
  #allocation0 [shape = 'u32[]', space=smem, size = 0x4, offset = 0x4, fixed_abs, tag = 'smem constant byte address 0x4 - core index']
  #allocation1 [shape = 'u32[72,128]{1,0:T(1,128)}', space=vmem, size = 0x9000, scoped, tag = 'internal scratch']
  %s0 = inlined_call_operand.vmem [shape: f32[200,32], index: 0, kind: input, shape index: {}]
  %s1 = inlined_call_operand.vmem [shape: f32[32,32], index: 1, kind: input, shape index: {}]
  %s2 = inlined_call_operand.vmem [shape: f32[1,32], index: 2, kind: input, shape index: {}]
  %s3 = inlined_call_operand.vmem [shape: f32[32,32], index: 3, kind: input, shape index: {}]
  %s4 = inlined_call_operand.vmem [shape: f32[1,32], index: 4, kind: input, shape index: {}]
  %s5 = inlined_call_operand.vmem [shape: f32[32,16], index: 5, kind: input, shape index: {}]
  %s6 = inlined_call_operand.vmem [shape: f32[1,16], index: 6, kind: input, shape index: {}]
  %s7 = inlined_call_operand.vmem [shape: f32[200,16], index: 7, kind: output, shape index: {}]
  %s8 = sld [smem:[#allocation0]]
  $region109: #{tpu_custom_call.1} parent=0
    _
  %s10 = ssub.s32 1, %s8
  %s11 = scalar_select 0, %s10, %s8
  $region1: #{tpu_custom_call.1} parent=0
    #allocation2 [shape = 'u8[106496]{0}', space=vmem, size = 0x1a000, scoped, tag = 'output window, operand 0']
    loop: start=0, step=1, limit=4
    $region2: #{tpu_custom_call.1} parent=1 // loop_pre_header
      _
    $region3: #{tpu_custom_call.1} parent=1 // loop_header
      %s13 = sphi 0, %s17
      %p14 = scmp.ge.s32.totalorder %s13, 4
      %s23 = sphi 0, %s25
      %s26 = sphi 0, %s23
      %s27 = sphi 0, %s26
      %s43 = sphi 0, %s27
      %s47 = sphi 0, %s47
      %s49 = sphi 0, %s47
      %s50 = sphi 0, %s49
      %s64 = sphi 0, %s50
      %s68 = sphi 0, %s68
      %s70 = sphi 0, %s68
      %s71 = sphi 0, %s70
      %s85 = sphi 0, %s71
      %s89 = sphi 0, %s89
      %s91 = sphi 0, %s89
      %s92 = sphi 0, %s91
      %s106 = sphi 0, %s92
      %s110 = sphi 0, %s110
      %s112 = sphi 0, %s110
      %s113 = sphi 0, %s112
      %s127 = sphi 0, %s113
      %s131 = sphi 0, %s131
      %s133 = sphi 0, %s131
      %s134 = sphi 0, %s133
      %s148 = sphi 0, %s134
      %s152 = sphi 0, %s152
      %s154 = sphi 0, %s152
      %s155 = sphi 0, %s154
      %s169 = sphi 0, %s155
      %s175 = sphi 0, %s177
      %s178 = sphi 0, %s175
      %s179 = sphi 0, %s178
      %s195 = sphi 0, %s179
    $region4: #{tpu_custom_call.1} parent=1 // loop_header_branch
      %16 = sbr.rel (%p14) target = $region8
    $region5: #{tpu_custom_call.1} parent=1 // loop_body
      %s18 = ssub.s32 %s13, 1
      %s19 = ssub.s32 %s13, 2
      %s20 = sadd.s32 %s13, 1
      %s21 = ssub.s32 %s13, %s20
      %p22 = scmp.eq.s32.totalorder %s21, 0
      %s24 = sadd.s32 %s23, 1
      %s25 = scalar_select %p22, %s23, %s24
      %p28 = pneg %p22
      %p29 = scmp.eq.s32.totalorder %s13, 1
      %p30 = por %p28, %p29
      %p31 = scmp.ne.s32.totalorder %s23, %s26
      %p32 = scmp.eq.s32.totalorder %s13, 0
      %p33 = por %p31, %p32
      %p34 = scmp.ne.s32.totalorder %s23, %s26
      %p35 = scmp.eq.s32.totalorder %s18, 1
      %p36 = por %p34, %p35
      %p37 = scmp.ne.s32.totalorder %s26, %s27
      %p38 = scmp.eq.s32.totalorder %s18, 0
      %p39 = por %p37, %p38
      %p40 = scmp.ne.s32.totalorder %s26, %s27
      %p41 = scmp.eq.s32.totalorder %s19, 1
      %p42 = por %p40, %p41
      %p44 = scmp.ne.s32.totalorder %s27, %s43
      %p45 = scmp.eq.s32.totalorder %s19, 0
      %p46 = por %p44, %p45
      %s48 = sadd.s32 %s47, 1
      %p51 = scmp.eq.s32.totalorder %s13, 1
      %p52 = scmp.ne.s32.totalorder %s47, %s49
      %p53 = scmp.eq.s32.totalorder %s13, 0
      %p54 = por %p52, %p53
      %p55 = scmp.ne.s32.totalorder %s47, %s49
      %p56 = scmp.eq.s32.totalorder %s18, 1
      %p57 = por %p55, %p56
      %p58 = scmp.ne.s32.totalorder %s49, %s50
      %p59 = scmp.eq.s32.totalorder %s18, 0
      %p60 = por %p58, %p59
      %p61 = scmp.ne.s32.totalorder %s49, %s50
      %p62 = scmp.eq.s32.totalorder %s19, 1
      %p63 = por %p61, %p62
      %p65 = scmp.ne.s32.totalorder %s50, %s64
      %p66 = scmp.eq.s32.totalorder %s19, 0
      %p67 = por %p65, %p66
      %s69 = sadd.s32 %s68, 1
      %p72 = scmp.eq.s32.totalorder %s13, 1
      %p73 = scmp.ne.s32.totalorder %s68, %s70
      %p74 = scmp.eq.s32.totalorder %s13, 0
      %p75 = por %p73, %p74
      %p76 = scmp.ne.s32.totalorder %s68, %s70
      %p77 = scmp.eq.s32.totalorder %s18, 1
      %p78 = por %p76, %p77
      %p79 = scmp.ne.s32.totalorder %s70, %s71
      %p80 = scmp.eq.s32.totalorder %s18, 0
      %p81 = por %p79, %p80
      %p82 = scmp.ne.s32.totalorder %s70, %s71
      %p83 = scmp.eq.s32.totalorder %s19, 1
      %p84 = por %p82, %p83
      %p86 = scmp.ne.s32.totalorder %s71, %s85
      %p87 = scmp.eq.s32.totalorder %s19, 0
      %p88 = por %p86, %p87
      %s90 = sadd.s32 %s89, 1
      %p93 = scmp.eq.s32.totalorder %s13, 1
      %p94 = scmp.ne.s32.totalorder %s89, %s91
      %p95 = scmp.eq.s32.totalorder %s13, 0
      %p96 = por %p94, %p95
      %p97 = scmp.ne.s32.totalorder %s89, %s91
      %p98 = scmp.eq.s32.totalorder %s18, 1
      %p99 = por %p97, %p98
      %p100 = scmp.ne.s32.totalorder %s91, %s92
      %p101 = scmp.eq.s32.totalorder %s18, 0
      %p102 = por %p100, %p101
      %p103 = scmp.ne.s32.totalorder %s91, %s92
      %p104 = scmp.eq.s32.totalorder %s19, 1
      %p105 = por %p103, %p104
      %p107 = scmp.ne.s32.totalorder %s92, %s106
      %p108 = scmp.eq.s32.totalorder %s19, 0
      %p109 = por %p107, %p108
      %s111 = sadd.s32 %s110, 1
      %p114 = scmp.eq.s32.totalorder %s13, 1
      %p115 = scmp.ne.s32.totalorder %s110, %s112
      %p116 = scmp.eq.s32.totalorder %s13, 0
      %p117 = por %p115, %p116
      %p118 = scmp.ne.s32.totalorder %s110, %s112
      %p119 = scmp.eq.s32.totalorder %s18, 1
      %p120 = por %p118, %p119
      %p121 = scmp.ne.s32.totalorder %s112, %s113
      %p122 = scmp.eq.s32.totalorder %s18, 0
      %p123 = por %p121, %p122
      %p124 = scmp.ne.s32.totalorder %s112, %s113
      %p125 = scmp.eq.s32.totalorder %s19, 1
      %p126 = por %p124, %p125
      %p128 = scmp.ne.s32.totalorder %s113, %s127
      %p129 = scmp.eq.s32.totalorder %s19, 0
      %p130 = por %p128, %p129
      %s132 = sadd.s32 %s131, 1
      %p135 = scmp.eq.s32.totalorder %s13, 1
      %p136 = scmp.ne.s32.totalorder %s131, %s133
      %p137 = scmp.eq.s32.totalorder %s13, 0
      %p138 = por %p136, %p137
      %p139 = scmp.ne.s32.totalorder %s131, %s133
      %p140 = scmp.eq.s32.totalorder %s18, 1
      %p141 = por %p139, %p140
      %p142 = scmp.ne.s32.totalorder %s133, %s134
      %p143 = scmp.eq.s32.totalorder %s18, 0
      %p144 = por %p142, %p143
      %p145 = scmp.ne.s32.totalorder %s133, %s134
      %p146 = scmp.eq.s32.totalorder %s19, 1
      %p147 = por %p145, %p146
      %p149 = scmp.ne.s32.totalorder %s134, %s148
      %p150 = scmp.eq.s32.totalorder %s19, 0
      %p151 = por %p149, %p150
      %s153 = sadd.s32 %s152, 1
      %p156 = scmp.eq.s32.totalorder %s13, 1
      %p157 = scmp.ne.s32.totalorder %s152, %s154
      %p158 = scmp.eq.s32.totalorder %s13, 0
      %p159 = por %p157, %p158
      %p160 = scmp.ne.s32.totalorder %s152, %s154
      %p161 = scmp.eq.s32.totalorder %s18, 1
      %p162 = por %p160, %p161
      %p163 = scmp.ne.s32.totalorder %s154, %s155
      %p164 = scmp.eq.s32.totalorder %s18, 0
      %p165 = por %p163, %p164
      %p166 = scmp.ne.s32.totalorder %s154, %s155
      %p167 = scmp.eq.s32.totalorder %s19, 1
      %p168 = por %p166, %p167
      %p170 = scmp.ne.s32.totalorder %s155, %s169
      %p171 = scmp.eq.s32.totalorder %s19, 0
      %p172 = por %p170, %p171
      %s173 = ssub.s32 %s13, %s20
      %p174 = scmp.eq.s32.totalorder %s173, 0
      %s176 = sadd.s32 %s175, 1
      %s177 = scalar_select %p174, %s175, %s176
      %p180 = pneg %p174
      %p181 = scmp.eq.s32.totalorder %s13, 1
      %p182 = por %p180, %p181
      %p183 = scmp.ne.s32.totalorder %s175, %s178
      %p184 = scmp.eq.s32.totalorder %s13, 0
      %p185 = por %p183, %p184
      %p186 = scmp.ne.s32.totalorder %s175, %s178
      %p187 = scmp.eq.s32.totalorder %s18, 1
      %p188 = por %p186, %p187
      %p189 = scmp.ne.s32.totalorder %s178, %s179
      %p190 = scmp.eq.s32.totalorder %s18, 0
      %p191 = por %p189, %p190
      %p192 = scmp.ne.s32.totalorder %s178, %s179
      %p193 = scmp.eq.s32.totalorder %s19, 1
      %p194 = por %p192, %p193
      %p196 = scmp.ne.s32.totalorder %s179, %s195
      %p197 = scmp.eq.s32.totalorder %s19, 0
      %p198 = por %p196, %p197
      %p199 = scmp.le.s32.totalorder 1, %s13
      %p200 = scmp.lt.s32.totalorder %s13, 3
      %p201 = pnand %p199, %p200
      %p202 = pneg %p201
      // Predicated region
      $region9: #{tpu_custom_call.1} parent=5 // pred_check
        _
      $region10: #{tpu_custom_call.1} parent=5 // pred_check_branch
        %204 = sbr.rel (%p201) target = $region12
      $region11: #{tpu_custom_call.1} parent=5 // pred_region
        %s205 = ssub.s32 %s13, 1
        // Predicated region
        $region13: #{tpu_custom_call.1} parent=11 // pred_check
          %p206 = pneg %p60
        $region14: #{tpu_custom_call.1} parent=11 // pred_check_branch
          %208 = sbr.rel (%p206) target = $region16
        $region15: #{tpu_custom_call.1} parent=11 // pred_region
          _
        $region16: #{tpu_custom_call.1} parent=11 // pred_fallthru
          _
        // Predicated region
        $region17: #{tpu_custom_call.1} parent=11 // pred_check
          %p209 = pneg %p81
        $region18: #{tpu_custom_call.1} parent=11 // pred_check_branch
          %211 = sbr.rel (%p209) target = $region20
        $region19: #{tpu_custom_call.1} parent=11 // pred_region
          _
        $region20: #{tpu_custom_call.1} parent=11 // pred_fallthru
          _
        // Predicated region
        $region21: #{tpu_custom_call.1} parent=11 // pred_check
          %p212 = pneg %p102
        $region22: #{tpu_custom_call.1} parent=11 // pred_check_branch
          %214 = sbr.rel (%p212) target = $region24
        $region23: #{tpu_custom_call.1} parent=11 // pred_region
          _
        $region24: #{tpu_custom_call.1} parent=11 // pred_fallthru
          _
        // Predicated region
        $region25: #{tpu_custom_call.1} parent=11 // pred_check
          %p215 = pneg %p123
        $region26: #{tpu_custom_call.1} parent=11 // pred_check_branch
          %217 = sbr.rel (%p215) target = $region28
        $region27: #{tpu_custom_call.1} parent=11 // pred_region
          _
        $region28: #{tpu_custom_call.1} parent=11 // pred_fallthru
          _
        // Predicated region
        $region29: #{tpu_custom_call.1} parent=11 // pred_check
          %p218 = pneg %p144
        $region30: #{tpu_custom_call.1} parent=11 // pred_check_branch
          %220 = sbr.rel (%p218) target = $region32
        $region31: #{tpu_custom_call.1} parent=11 // pred_region
          _
        $region32: #{tpu_custom_call.1} parent=11 // pred_fallthru
          _
        // Predicated region
        $region33: #{tpu_custom_call.1} parent=11 // pred_check
          %p221 = pneg %p165
        $region34: #{tpu_custom_call.1} parent=11 // pred_check_branch
          %223 = sbr.rel (%p221) target = $region36
        $region35: #{tpu_custom_call.1} parent=11 // pred_region
          _
        $region36: #{tpu_custom_call.1} parent=11 // pred_fallthru
          _
      $region12: #{tpu_custom_call.1} parent=5 // pred_fallthru
        _
      %p224 = scmp.lt.s32.totalorder %s13, 2
      // Predicated region
      $region37: #{tpu_custom_call.1} parent=5 // pred_check
        %p225 = pneg %p224
      $region38: #{tpu_custom_call.1} parent=5 // pred_check_branch
        %227 = sbr.rel (%p225) target = $region40
      $region39: #{tpu_custom_call.1} parent=5 // pred_region
        // Predicated region
        $region41: #{tpu_custom_call.1} parent=39 // pred_check
          %p228 = pneg %p33
        $region42: #{tpu_custom_call.1} parent=39 // pred_check_branch
          %230 = sbr.rel (%p228) target = $region44
        $region43: #{tpu_custom_call.1} parent=39 // pred_region
          %s231 = smul.u32 13, %s13
          %s232 = ssub.s32 25, %s231
          %p233 = scmp.lt.s32.totalorder %s232, 13
          %s234 = scalar_select %p233, %s232, 13
          %s235 = smul.u32 8, %s234
          %p236 = scmp.lt.s32.totalorder %s231, 24
          %s237 = scalar_select %p236, %s231, 24
          %s238 = smul.addr %s237, 8
          %s239 = scalar_lea.vmem %s0, %s238
          %s240 = smul.u32 13, %s13
          %s241 = ssub.s32 25, %s240
          %p242 = scmp.lt.s32.totalorder %s241, 13
          %s243 = scalar_select %p242, %s241, 13
          %s244 = smul.u32 8, %s243
        $region44: #{tpu_custom_call.1} parent=39 // pred_fallthru
          _
      $region40: #{tpu_custom_call.1} parent=5 // pred_fallthru
        _
      %p245 = scmp.le.s32.totalorder 1, %s13
      %p246 = scmp.lt.s32.totalorder %s13, 3
      %p247 = pnand %p245, %p246
      %p248 = pneg %p247
      // Predicated region
      $region45: #{tpu_custom_call.1} parent=5 // pred_check
        _
      $region46: #{tpu_custom_call.1} parent=5 // pred_check_branch
        %250 = sbr.rel (%p247) target = $region48
      $region47: #{tpu_custom_call.1} parent=5 // pred_region
        %s251 = ssub.s32 %s13, 1
        %s252 = smul.u32 13, %s18
        %s253 = ssub.s32 25, %s252
        %p254 = scmp.lt.s32.totalorder %s253, 13
        %s255 = scalar_select %p254, %s253, 13
        %s256 = smul.u32 8, %s255
        %p257 = scmp.lt.s32.totalorder %s252, 24
        %s258 = scalar_select %p257, %s252, 24
        %s259 = smul.addr %s258, 8
        %s260 = scalar_lea.vmem %s0, %s259
        %p261 = pneg %p39
        %p262 = pneg %p36
        %p263 = pneg %p60
        %p264 = pneg %p57
        %p265 = pneg %p81
        %p266 = pneg %p78
        %p267 = pneg %p102
        %p268 = pneg %p99
        %p269 = pneg %p123
        %p270 = pneg %p120
        %p271 = pneg %p144
        %p272 = pneg %p141
        %p273 = pneg %p165
        %p274 = pneg %p162
        %p275 = pneg %p191
        %p276 = pneg %p188
        %s277 = sand.u32 %s178, 1
        %s278 = sand.u32 %s178, 1
        %s279 = smul.addr %s278, 104
        %s280 = scalar_lea.vmem [#allocation2], %s279
        %s281 = smul.u32 13, %s18
        %s282 = ssub.s32 25, %s281
        %p283 = scmp.lt.s32.totalorder %s282, 13
        %s284 = scalar_select %p283, %s282, 13
        %s285 = smul.u32 8, %s284
        %p286 = scmp.lt.s32.totalorder %s281, 24
        %s287 = scalar_select %p286, %s281, 24
        %s288 = smul.addr %s287, 8
        %s289 = scalar_lea.vmem %s0, %s288
        %s290 = smul.u32 13, %s18
        %s291 = ssub.s32 25, %s290
        %p292 = scmp.lt.s32.totalorder %s291, 13
        %s293 = scalar_select %p292, %s291, 13
        %s294 = smul.u32 8, %s293
        %s295 = smul.u32 13, %s18
        %s296 = ssub.s32 25, %s295
        %p297 = scmp.lt.s32.totalorder %s296, 13
        %s298 = scalar_select %p297, %s296, 13
        %s299 = smul.u32 8, %s298
        %v300 = vld [vmem:[%s289] sm:$0xff]
        %v301 = vld [vmem:[%s289 + $0x8] sm:$0xff]
        %v302 = vld [vmem:[%s289 + $0x10] sm:$0xff]
        %v303 = vld [vmem:[%s289 + $0x18] sm:$0xff]
        %v304 = vld [vmem:[%s289 + $0x20] sm:$0xff]
        %v305 = vld [vmem:[%s289 + $0x28] sm:$0xff]
        %v306 = vld [vmem:[%s289 + $0x30] sm:$0xff]
        %v307 = vld [vmem:[%s289 + $0x38] sm:$0xff]
        %v308 = vld [vmem:[%s289 + $0x40] sm:$0xff]
        %v309 = vld [vmem:[%s289 + $0x48] sm:$0xff]
        %v310 = vld [vmem:[%s289 + $0x50] sm:$0xff]
        %v311 = vld [vmem:[%s289 + $0x58] sm:$0xff]
        %v312 = vld [vmem:[%s289 + $0x60] sm:$0xff]
        %v313 = vld [vmem:[%s1] sm:$0xff]
        %v314 = vld [vmem:[%s1 + $0x8] sm:$0xff]
        %v315 = vld [vmem:[%s1 + $0x10] sm:$0xff]
        %v316 = vld [vmem:[%s1 + $0x18] sm:$0xff]
        %v317 = vld [vmem:[%s2] sm:$0x1]
        %v319 = vperm.slane %v317, 0
        %vm321 = vcmask 261120
        %v323 = vsel %vm321, %v300, 0
        %v326 = vsel %vm321, %v301, 0
        %v329 = vsel %vm321, %v302, 0
        %v332 = vsel %vm321, %v303, 0
        %v335 = vsel %vm321, %v304, 0
        %v338 = vsel %vm321, %v305, 0
        %v341 = vsel %vm321, %v306, 0
        %v344 = vsel %vm321, %v307, 0
        %v347 = vsel %vm321, %v308, 0
        %v350 = vsel %vm321, %v309, 0
        %v353 = vsel %vm321, %v310, 0
        %v356 = vsel %vm321, %v311, 0
        %v359 = vsel %vm321, %v312, 0
        %361 = vmatpush.msra.mxu0 0.0
        %362 = vmatpush.msra.mxu0 0.0
        %363 = vmatpush.msra.mxu0 0.0
        %364 = vmatpush.msra.mxu0 0.0
        %365 = vmatpush.msra.mxu0 0.0
        %366 = vmatpush.msra.mxu0 0.0
        %367 = vmatpush.msra.mxu0 0.0
        %368 = vmatpush.msra.mxu0 0.0
        %369 = vmatpush.msra.mxu0 0.0
        %370 = vmatpush.msra.mxu0 0.0
        %371 = vmatpush.msra.mxu0 0.0
        %372 = vmatpush.msra.mxu0 0.0
        %373 = vmatpush.msra.mxu0 %v316
        %374 = vmatpush.msra.mxu0 %v315
        %375 = vmatpush.msra.mxu0 %v314
        %376 = vmatpush.msra.mxu0 %v313
        %377 = vmatmul.f32.gmra.mxu0 %v323
        %v378 = vpop.f32.mrf.mxu0
        %v379 = vadd.f32 %v319, %v378
        %380 = vmatmul.f32.gmra.mxu0 %v326
        %v381 = vpop.f32.mrf.mxu0
        %v382 = vadd.f32 %v319, %v381
        %383 = vmatmul.f32.gmra.mxu0 %v329
        %v384 = vpop.f32.mrf.mxu0
        %v385 = vadd.f32 %v319, %v384
        %386 = vmatmul.f32.gmra.mxu0 %v332
        %v387 = vpop.f32.mrf.mxu0
        %v388 = vadd.f32 %v319, %v387
        %389 = vmatmul.f32.gmra.mxu0 %v335
        %v390 = vpop.f32.mrf.mxu0
        %v391 = vadd.f32 %v319, %v390
        %392 = vmatmul.f32.gmra.mxu0 %v338
        %v393 = vpop.f32.mrf.mxu0
        %v394 = vadd.f32 %v319, %v393
        %395 = vmatmul.f32.gmra.mxu0 %v341
        %v396 = vpop.f32.mrf.mxu0
        %v397 = vadd.f32 %v319, %v396
        %398 = vmatmul.f32.gmra.mxu0 %v344
        %v399 = vpop.f32.mrf.mxu0
        %v400 = vadd.f32 %v319, %v399
        %401 = vmatmul.f32.gmra.mxu0 %v347
        %v402 = vpop.f32.mrf.mxu0
        %v403 = vadd.f32 %v319, %v402
        %404 = vmatmul.f32.gmra.mxu0 %v350
        %v405 = vpop.f32.mrf.mxu0
        %v406 = vadd.f32 %v319, %v405
        %407 = vmatmul.f32.gmra.mxu0 %v353
        %v408 = vpop.f32.mrf.mxu0
        %v409 = vadd.f32 %v319, %v408
        %410 = vmatmul.f32.gmra.mxu0 %v356
        %v411 = vpop.f32.mrf.mxu0
        %v412 = vadd.f32 %v319, %v411
        %413 = vmatmul.f32.gmra.mxu0 %v359
        %v414 = vpop.f32.mrf.mxu0
        %v415 = vadd.f32 %v319, %v414
        %416 = vdwg.mxu0
        %v417 = vmax.f32 %v379, 0.0
        %v418 = vmax.f32 %v382, 0.0
        %v419 = vmax.f32 %v385, 0.0
        %v420 = vmax.f32 %v388, 0.0
        %v421 = vmax.f32 %v391, 0.0
        %v422 = vmax.f32 %v394, 0.0
        %v423 = vmax.f32 %v397, 0.0
        %v424 = vmax.f32 %v400, 0.0
        %v425 = vmax.f32 %v403, 0.0
        %v426 = vmax.f32 %v406, 0.0
        %v427 = vmax.f32 %v409, 0.0
        %v428 = vmax.f32 %v412, 0.0
        %v429 = vmax.f32 %v415, 0.0
        %v430 = vld [vmem:[%s3] sm:$0xff]
        %v431 = vld [vmem:[%s3 + $0x8] sm:$0xff]
        %v432 = vld [vmem:[%s3 + $0x10] sm:$0xff]
        %v433 = vld [vmem:[%s3 + $0x18] sm:$0xff]
        %v434 = vld [vmem:[%s4] sm:$0x1]
        %v436 = vperm.slane %v434, 0
        %v439 = vsel %vm321, %v417, 0
        %v442 = vsel %vm321, %v418, 0
        %v445 = vsel %vm321, %v419, 0
        %v448 = vsel %vm321, %v420, 0
        %v451 = vsel %vm321, %v421, 0
        %v454 = vsel %vm321, %v422, 0
        %v457 = vsel %vm321, %v423, 0
        %v460 = vsel %vm321, %v424, 0
        %v463 = vsel %vm321, %v425, 0
        %v466 = vsel %vm321, %v426, 0
        %v469 = vsel %vm321, %v427, 0
        %v472 = vsel %vm321, %v428, 0
        %v475 = vsel %vm321, %v429, 0
        %477 = vmatpush.msra.mxu0 0.0
        %478 = vmatpush.msra.mxu0 0.0
        %479 = vmatpush.msra.mxu0 0.0
        %480 = vmatpush.msra.mxu0 0.0
        %481 = vmatpush.msra.mxu0 0.0
        %482 = vmatpush.msra.mxu0 0.0
        %483 = vmatpush.msra.mxu0 0.0
        %484 = vmatpush.msra.mxu0 0.0
        %485 = vmatpush.msra.mxu0 0.0
        %486 = vmatpush.msra.mxu0 0.0
        %487 = vmatpush.msra.mxu0 0.0
        %488 = vmatpush.msra.mxu0 0.0
        %489 = vmatpush.msra.mxu0 %v433
        %490 = vmatpush.msra.mxu0 %v432
        %491 = vmatpush.msra.mxu0 %v431
        %492 = vmatpush.msra.mxu0 %v430
        %493 = vmatmul.f32.gmra.mxu0 %v439
        %v494 = vpop.f32.mrf.mxu0
        %v495 = vadd.f32 %v436, %v494
        %496 = vmatmul.f32.gmra.mxu0 %v442
        %v497 = vpop.f32.mrf.mxu0
        %v498 = vadd.f32 %v436, %v497
        %499 = vmatmul.f32.gmra.mxu0 %v445
        %v500 = vpop.f32.mrf.mxu0
        %v501 = vadd.f32 %v436, %v500
        %502 = vmatmul.f32.gmra.mxu0 %v448
        %v503 = vpop.f32.mrf.mxu0
        %v504 = vadd.f32 %v436, %v503
        %505 = vmatmul.f32.gmra.mxu0 %v451
        %v506 = vpop.f32.mrf.mxu0
        %v507 = vadd.f32 %v436, %v506
        %508 = vmatmul.f32.gmra.mxu0 %v454
        %v509 = vpop.f32.mrf.mxu0
        %v510 = vadd.f32 %v436, %v509
        %511 = vmatmul.f32.gmra.mxu0 %v457
        %v512 = vpop.f32.mrf.mxu0
        %v513 = vadd.f32 %v436, %v512
        %514 = vmatmul.f32.gmra.mxu0 %v460
        %v515 = vpop.f32.mrf.mxu0
        %v516 = vadd.f32 %v436, %v515
        %517 = vmatmul.f32.gmra.mxu0 %v463
        %v518 = vpop.f32.mrf.mxu0
        %v519 = vadd.f32 %v436, %v518
        %520 = vmatmul.f32.gmra.mxu0 %v466
        %v521 = vpop.f32.mrf.mxu0
        %v522 = vadd.f32 %v436, %v521
        %523 = vmatmul.f32.gmra.mxu0 %v469
        %v524 = vpop.f32.mrf.mxu0
        %v525 = vadd.f32 %v436, %v524
        %526 = vmatmul.f32.gmra.mxu0 %v472
        %v527 = vpop.f32.mrf.mxu0
        %v528 = vadd.f32 %v436, %v527
        %529 = vmatmul.f32.gmra.mxu0 %v475
        %v530 = vpop.f32.mrf.mxu0
        %v531 = vadd.f32 %v436, %v530
        %532 = vdwg.mxu0
        %v533 = vmax.f32 %v495, 0.0
        %v534 = vmax.f32 %v498, 0.0
        %v535 = vmax.f32 %v501, 0.0
        %v536 = vmax.f32 %v504, 0.0
        %v537 = vmax.f32 %v507, 0.0
        %v538 = vmax.f32 %v510, 0.0
        %v539 = vmax.f32 %v513, 0.0
        %v540 = vmax.f32 %v516, 0.0
        %v541 = vmax.f32 %v519, 0.0
        %v542 = vmax.f32 %v522, 0.0
        %v543 = vmax.f32 %v525, 0.0
        %v544 = vmax.f32 %v528, 0.0
        %v545 = vmax.f32 %v531, 0.0
        %v546 = vld [vmem:[%s5] sm:$0xff]
        %v547 = vld [vmem:[%s5 + $0x8] sm:$0xff]
        %v548 = vld [vmem:[%s5 + $0x10] sm:$0xff]
        %v549 = vld [vmem:[%s5 + $0x18] sm:$0xff]
        %v550 = vld [vmem:[%s6] sm:$0x1]
        %v552 = vperm.slane %v550, 0
        %v555 = vsel %vm321, %v533, 0
        %v558 = vsel %vm321, %v534, 0
        %v561 = vsel %vm321, %v535, 0
        %v564 = vsel %vm321, %v536, 0
        %v567 = vsel %vm321, %v537, 0
        %v570 = vsel %vm321, %v538, 0
        %v573 = vsel %vm321, %v539, 0
        %v576 = vsel %vm321, %v540, 0
        %v579 = vsel %vm321, %v541, 0
        %v582 = vsel %vm321, %v542, 0
        %v585 = vsel %vm321, %v543, 0
        %v588 = vsel %vm321, %v544, 0
        %v591 = vsel %vm321, %v545, 0
        %593 = vmatpush.msra.mxu0 0.0
        %594 = vmatpush.msra.mxu0 0.0
        %595 = vmatpush.msra.mxu0 0.0
        %596 = vmatpush.msra.mxu0 0.0
        %597 = vmatpush.msra.mxu0 0.0
        %598 = vmatpush.msra.mxu0 0.0
        %599 = vmatpush.msra.mxu0 0.0
        %600 = vmatpush.msra.mxu0 0.0
        %601 = vmatpush.msra.mxu0 0.0
        %602 = vmatpush.msra.mxu0 0.0
        %603 = vmatpush.msra.mxu0 0.0
        %604 = vmatpush.msra.mxu0 0.0
        %605 = vmatpush.msra.mxu0 %v549
        %606 = vmatpush.msra.mxu0 %v548
        %607 = vmatpush.msra.mxu0 %v547
        %608 = vmatpush.msra.mxu0 %v546
        %609 = vmatmul.f32.gmra.mxu0 %v555
        %v610 = vpop.f32.mrf.mxu0
        %v611 = vadd.f32 %v552, %v610
        %612 = vmatmul.f32.gmra.mxu0 %v558
        %v613 = vpop.f32.mrf.mxu0
        %v614 = vadd.f32 %v552, %v613
        %615 = vmatmul.f32.gmra.mxu0 %v561
        %v616 = vpop.f32.mrf.mxu0
        %v617 = vadd.f32 %v552, %v616
        %618 = vmatmul.f32.gmra.mxu0 %v564
        %v619 = vpop.f32.mrf.mxu0
        %v620 = vadd.f32 %v552, %v619
        %621 = vmatmul.f32.gmra.mxu0 %v567
        %v622 = vpop.f32.mrf.mxu0
        %v623 = vadd.f32 %v552, %v622
        %624 = vmatmul.f32.gmra.mxu0 %v570
        %v625 = vpop.f32.mrf.mxu0
        %v626 = vadd.f32 %v552, %v625
        %627 = vmatmul.f32.gmra.mxu0 %v573
        %v628 = vpop.f32.mrf.mxu0
        %v629 = vadd.f32 %v552, %v628
        %630 = vmatmul.f32.gmra.mxu0 %v576
        %v631 = vpop.f32.mrf.mxu0
        %v632 = vadd.f32 %v552, %v631
        %633 = vmatmul.f32.gmra.mxu0 %v579
        %v634 = vpop.f32.mrf.mxu0
        %v635 = vadd.f32 %v552, %v634
        %636 = vmatmul.f32.gmra.mxu0 %v582
        %v637 = vpop.f32.mrf.mxu0
        %v638 = vadd.f32 %v552, %v637
        %639 = vmatmul.f32.gmra.mxu0 %v585
        %v640 = vpop.f32.mrf.mxu0
        %v641 = vadd.f32 %v552, %v640
        %642 = vmatmul.f32.gmra.mxu0 %v588
        %v643 = vpop.f32.mrf.mxu0
        %v644 = vadd.f32 %v552, %v643
        %645 = vmatmul.f32.gmra.mxu0 %v591
        %v646 = vpop.f32.mrf.mxu0
        %v647 = vadd.f32 %v552, %v646
        %648 = vdwg.mxu0
        %vm649 = vcmask 130048
        %650 = vst.msk [vmem:[%s280] sm:$0xff] %vm649, %v611
        %651 = vst.msk [vmem:[%s280 + $0x8] sm:$0xff] %vm649, %v614
        %652 = vst.msk [vmem:[%s280 + $0x10] sm:$0xff] %vm649, %v617
        %653 = vst.msk [vmem:[%s280 + $0x18] sm:$0xff] %vm649, %v620
        %654 = vst.msk [vmem:[%s280 + $0x20] sm:$0xff] %vm649, %v623
        %655 = vst.msk [vmem:[%s280 + $0x28] sm:$0xff] %vm649, %v626
        %656 = vst.msk [vmem:[%s280 + $0x30] sm:$0xff] %vm649, %v629
        %657 = vst.msk [vmem:[%s280 + $0x38] sm:$0xff] %vm649, %v632
        %658 = vst.msk [vmem:[%s280 + $0x40] sm:$0xff] %vm649, %v635
        %659 = vst.msk [vmem:[%s280 + $0x48] sm:$0xff] %vm649, %v638
        %660 = vst.msk [vmem:[%s280 + $0x50] sm:$0xff] %vm649, %v641
        %661 = vst.msk [vmem:[%s280 + $0x58] sm:$0xff] %vm649, %v644
        %662 = vst.msk [vmem:[%s280 + $0x60] sm:$0xff] %vm649, %v647
        %s663 = sand.u32 %s178, 1
        %s664 = sand.u32 %s178, 1
        %s665 = smul.addr %s664, 104
        %s666 = scalar_lea.vmem [#allocation2], %s665
        // Predicated region
        $region49: #{tpu_custom_call.1} parent=47 // pred_check
          %p667 = pneg %p188
        $region50: #{tpu_custom_call.1} parent=47 // pred_check_branch
          %669 = sbr.rel (%p667) target = $region52
        $region51: #{tpu_custom_call.1} parent=47 // pred_region
          %s670 = smul.u32 13, %s18
          %s671 = ssub.s32 25, %s670
          %p672 = scmp.lt.s32.totalorder %s671, 13
          %s673 = scalar_select %p672, %s671, 13
          %s674 = smul.u32 8, %s673
          %p675 = scmp.ne.s32.totalorder 0, %s674
          %s676 = smul.addr %s670, 8
          %s677 = scalar_lea.vmem %s7, %s676
          // Predicated region
          $region53: #{tpu_custom_call.1} parent=51 // pred_check
            %p678 = pneg %p675
          $region54: #{tpu_custom_call.1} parent=51 // pred_check_branch
            %680 = sbr.rel (%p678) target = $region56
          $region55: #{tpu_custom_call.1} parent=51 // pred_region
            // Predicated region
            $region57: #{tpu_custom_call.1} parent=55 // pred_check
              _
            $region58: #{tpu_custom_call.1} parent=55 // pred_check_branch
              %682 = sbr.rel (0) target = $region60
            $region59: #{tpu_custom_call.1} parent=55 // pred_region
              // Predicated region
              $region79: #{tpu_custom_call.1} parent=59 // pred_check
                _
              $region80: #{tpu_custom_call.1} parent=59 // pred_check_branch
                %757 = sbr.rel (0) target = $region82
              $region81: #{tpu_custom_call.1} parent=59 // pred_region
                %s758 = sdiv.u32.pop %s673, 13
                %s759 = srem.u32.pop %s673, 13
                // While loop
                $region83: #{tpu_custom_call.1} parent=81 // loop_pre_header
                  _
                $region84: #{tpu_custom_call.1} parent=81 // loop_header
                  %s761 = sphi 0, %s763
                  %p762 = scmp.ge.s32.totalorder %s761, %s758
                  %s766 = sphi 0, %s797
                  %s767 = sphi %s666, %s800
                  %s768 = sphi %s677, %s801
                $region85: #{tpu_custom_call.1} parent=81 // loop_header_branch
                  %765 = sbr.rel (%p762) target = $region89
                $region86: #{tpu_custom_call.1} parent=81 // loop_body
                  %v769 = vld [vmem:[%s767] sm:$0xff]
                  %770 = vst [vmem:[%s768] sm:$0xff] %v769
                  %v771 = vld [vmem:[%s767 + $0x8] sm:$0xff]
                  %772 = vst [vmem:[%s768 + $0x8] sm:$0xff] %v771
                  %v773 = vld [vmem:[%s767 + $0x10] sm:$0xff]
                  %774 = vst [vmem:[%s768 + $0x10] sm:$0xff] %v773
                  %v775 = vld [vmem:[%s767 + $0x18] sm:$0xff]
                  %776 = vst [vmem:[%s768 + $0x18] sm:$0xff] %v775
                  %v777 = vld [vmem:[%s767 + $0x20] sm:$0xff]
                  %778 = vst [vmem:[%s768 + $0x20] sm:$0xff] %v777
                  %v779 = vld [vmem:[%s767 + $0x28] sm:$0xff]
                  %780 = vst [vmem:[%s768 + $0x28] sm:$0xff] %v779
                  %v781 = vld [vmem:[%s767 + $0x30] sm:$0xff]
                  %782 = vst [vmem:[%s768 + $0x30] sm:$0xff] %v781
                  %v783 = vld [vmem:[%s767 + $0x38] sm:$0xff]
                  %784 = vst [vmem:[%s768 + $0x38] sm:$0xff] %v783
                  %v785 = vld [vmem:[%s767 + $0x40] sm:$0xff]
                  %786 = vst [vmem:[%s768 + $0x40] sm:$0xff] %v785
                  %v787 = vld [vmem:[%s767 + $0x48] sm:$0xff]
                  %788 = vst [vmem:[%s768 + $0x48] sm:$0xff] %v787
                  %v789 = vld [vmem:[%s767 + $0x50] sm:$0xff]
                  %790 = vst [vmem:[%s768 + $0x50] sm:$0xff] %v789
                  %v791 = vld [vmem:[%s767 + $0x58] sm:$0xff]
                  %792 = vst [vmem:[%s768 + $0x58] sm:$0xff] %v791
                  %v793 = vld [vmem:[%s767 + $0x60] sm:$0xff]
                  %794 = vst [vmem:[%s768 + $0x60] sm:$0xff] %v793
                  %s795 = sadd.s32 1, %s766
                  %p796 = scmp.ge.s32.totalorder %s795, %s758
                  %s797 = scalar_select %p796, 0, %s795
                  %s798 = smul.u32 %s797, 104
                  %s799 = smul.u32 %s797, 104
                  %s800 = scalar_lea.vmem %s666, %s798 [#allocation2]
                  %s801 = scalar_lea.vmem %s677, %s799
                $region87: #{tpu_custom_call.1} parent=81 // loop_footer
                  %s763 = sadd.s32 %s761, 1
                $region88: #{tpu_custom_call.1} parent=81 // loop_footer_branch
                  %760 = sbr.rel target = $region84
                $region89: #{tpu_custom_call.1} parent=81 // loop_exit
                  _
                %s802 = sdiv.u32.pop %s673, 13
                %s803 = srem.u32.pop %s673, 13
                %s804 = smul.u32 %s802, 13
                %s805 = smul.u32 8, %s804
                %s806 = scalar_lea.vmem %s666, %s805 [#allocation2]
                %s807 = smul.u32 8, %s804
                %s808 = scalar_lea.vmem %s677, %s807
                // While loop
                $region90: #{tpu_custom_call.1} parent=81 // loop_pre_header
                  _
                $region91: #{tpu_custom_call.1} parent=81 // loop_header
                  %s810 = sphi 0, %s812
                  %p811 = scmp.ge.s32.totalorder %s810, %s803
                  %s815 = sphi 0, %s822
                  %s816 = sphi %s806, %s825
                  %s817 = sphi %s808, %s826
                $region92: #{tpu_custom_call.1} parent=81 // loop_header_branch
                  %814 = sbr.rel (%p811) target = $region96
                $region93: #{tpu_custom_call.1} parent=81 // loop_body
                  %v818 = vld [vmem:[%s816] sm:$0xff]
                  %819 = vst [vmem:[%s817] sm:$0xff] %v818
                  %s820 = sadd.s32 1, %s815
                  %p821 = scmp.ge.s32.totalorder %s820, %s803
                  %s822 = scalar_select %p821, 0, %s820
                  %s823 = smul.u32 %s822, 8
                  %s824 = smul.u32 %s822, 8
                  %s825 = scalar_lea.vmem %s806, %s823 [#allocation2]
                  %s826 = scalar_lea.vmem %s808, %s824
                $region94: #{tpu_custom_call.1} parent=81 // loop_footer
                  %s812 = sadd.s32 %s810, 1
                $region95: #{tpu_custom_call.1} parent=81 // loop_footer_branch
                  %809 = sbr.rel target = $region91
                $region96: #{tpu_custom_call.1} parent=81 // loop_exit
                  _
              $region82: #{tpu_custom_call.1} parent=59 // pred_fallthru
                _
              // Predicated region
              $region97: #{tpu_custom_call.1} parent=59 // pred_check
                _
              $region98: #{tpu_custom_call.1} parent=59 // pred_check_branch
                %828 = sbr.rel target = $region100
              $region99: #{tpu_custom_call.1} parent=59 // pred_region
                _
              $region100: #{tpu_custom_call.1} parent=59 // pred_fallthru
                _
            $region60: #{tpu_custom_call.1} parent=55 // pred_fallthru
              _
            // Predicated region
            $region61: #{tpu_custom_call.1} parent=55 // pred_check
              _
            $region62: #{tpu_custom_call.1} parent=55 // pred_check_branch
              %684 = sbr.rel target = $region64
            $region63: #{tpu_custom_call.1} parent=55 // pred_region
              %s686 = ssub.s32 256, 1
              %s687 = sdiv.u32.pop %s673, 13
              %s688 = srem.u32.pop %s673, 13
              // While loop
              $region65: #{tpu_custom_call.1} parent=63 // loop_pre_header
                _
              $region66: #{tpu_custom_call.1} parent=63 // loop_header
                %s690 = sphi 0, %s692
                %p691 = scmp.ge.s32.totalorder %s690, %s687
                %s695 = sphi 0, %s726
                %s696 = sphi %s666, %s729
                %s697 = sphi %s677, %s730
              $region67: #{tpu_custom_call.1} parent=63 // loop_header_branch
                %694 = sbr.rel (%p691) target = $region71
              $region68: #{tpu_custom_call.1} parent=63 // loop_body
                %v698 = vld [vmem:[%s696] sm:%s686]
                %699 = vst [vmem:[%s697] sm:%s686] %v698
                %v700 = vld [vmem:[%s696 + $0x8] sm:%s686]
                %701 = vst [vmem:[%s697 + $0x8] sm:%s686] %v700
                %v702 = vld [vmem:[%s696 + $0x10] sm:%s686]
                %703 = vst [vmem:[%s697 + $0x10] sm:%s686] %v702
                %v704 = vld [vmem:[%s696 + $0x18] sm:%s686]
                %705 = vst [vmem:[%s697 + $0x18] sm:%s686] %v704
                %v706 = vld [vmem:[%s696 + $0x20] sm:%s686]
                %707 = vst [vmem:[%s697 + $0x20] sm:%s686] %v706
                %v708 = vld [vmem:[%s696 + $0x28] sm:%s686]
                %709 = vst [vmem:[%s697 + $0x28] sm:%s686] %v708
                %v710 = vld [vmem:[%s696 + $0x30] sm:%s686]
                %711 = vst [vmem:[%s697 + $0x30] sm:%s686] %v710
                %v712 = vld [vmem:[%s696 + $0x38] sm:%s686]
                %713 = vst [vmem:[%s697 + $0x38] sm:%s686] %v712
                %v714 = vld [vmem:[%s696 + $0x40] sm:%s686]
                %715 = vst [vmem:[%s697 + $0x40] sm:%s686] %v714
                %v716 = vld [vmem:[%s696 + $0x48] sm:%s686]
                %717 = vst [vmem:[%s697 + $0x48] sm:%s686] %v716
                %v718 = vld [vmem:[%s696 + $0x50] sm:%s686]
                %719 = vst [vmem:[%s697 + $0x50] sm:%s686] %v718
                %v720 = vld [vmem:[%s696 + $0x58] sm:%s686]
                %721 = vst [vmem:[%s697 + $0x58] sm:%s686] %v720
                %v722 = vld [vmem:[%s696 + $0x60] sm:%s686]
                %723 = vst [vmem:[%s697 + $0x60] sm:%s686] %v722
                %s724 = sadd.s32 1, %s695
                %p725 = scmp.ge.s32.totalorder %s724, %s687
                %s726 = scalar_select %p725, 0, %s724
                %s727 = smul.u32 %s726, 104
                %s728 = smul.u32 %s726, 104
                %s729 = scalar_lea.vmem %s666, %s727 [#allocation2]
                %s730 = scalar_lea.vmem %s677, %s728
              $region69: #{tpu_custom_call.1} parent=63 // loop_footer
                %s692 = sadd.s32 %s690, 1
              $region70: #{tpu_custom_call.1} parent=63 // loop_footer_branch
                %689 = sbr.rel target = $region66
              $region71: #{tpu_custom_call.1} parent=63 // loop_exit
                _
              %s731 = sdiv.u32.pop %s673, 13
              %s732 = srem.u32.pop %s673, 13
              %s733 = smul.u32 %s731, 13
              %s734 = smul.u32 8, %s733
              %s735 = scalar_lea.vmem %s666, %s734 [#allocation2]
              %s736 = smul.u32 8, %s733
              %s737 = scalar_lea.vmem %s677, %s736
              // While loop
              $region72: #{tpu_custom_call.1} parent=63 // loop_pre_header
                _
              $region73: #{tpu_custom_call.1} parent=63 // loop_header
                %s739 = sphi 0, %s741
                %p740 = scmp.ge.s32.totalorder %s739, %s732
                %s744 = sphi 0, %s751
                %s745 = sphi %s735, %s754
                %s746 = sphi %s737, %s755
              $region74: #{tpu_custom_call.1} parent=63 // loop_header_branch
                %743 = sbr.rel (%p740) target = $region78
              $region75: #{tpu_custom_call.1} parent=63 // loop_body
                %v747 = vld [vmem:[%s745] sm:%s686]
                %748 = vst [vmem:[%s746] sm:%s686] %v747
                %s749 = sadd.s32 1, %s744
                %p750 = scmp.ge.s32.totalorder %s749, %s732
                %s751 = scalar_select %p750, 0, %s749
                %s752 = smul.u32 %s751, 8
                %s753 = smul.u32 %s751, 8
                %s754 = scalar_lea.vmem %s735, %s752 [#allocation2]
                %s755 = scalar_lea.vmem %s737, %s753
              $region76: #{tpu_custom_call.1} parent=63 // loop_footer
                %s741 = sadd.s32 %s739, 1
              $region77: #{tpu_custom_call.1} parent=63 // loop_footer_branch
                %738 = sbr.rel target = $region73
              $region78: #{tpu_custom_call.1} parent=63 // loop_exit
                _
            $region64: #{tpu_custom_call.1} parent=55 // pred_fallthru
              _
          $region56: #{tpu_custom_call.1} parent=51 // pred_fallthru
            _
          %829 = vnop
        $region52: #{tpu_custom_call.1} parent=47 // pred_fallthru
          _
      $region48: #{tpu_custom_call.1} parent=5 // pred_fallthru
        _
      %p830 = scmp.le.s32.totalorder 2, %s13
      // Predicated region
      $region101: #{tpu_custom_call.1} parent=5 // pred_check
        %p831 = pneg %p830
      $region102: #{tpu_custom_call.1} parent=5 // pred_check_branch
        %833 = sbr.rel (%p831) target = $region104
      $region103: #{tpu_custom_call.1} parent=5 // pred_region
        %s834 = ssub.s32 %s13, 2
        // Predicated region
        $region105: #{tpu_custom_call.1} parent=103 // pred_check
          %p835 = pneg %p194
        $region106: #{tpu_custom_call.1} parent=103 // pred_check_branch
          %837 = sbr.rel (%p835) target = $region108
        $region107: #{tpu_custom_call.1} parent=103 // pred_region
          %s838 = sand.u32 %s179, 1
          %s839 = sand.u32 %s179, 1
          %s840 = smul.addr %s839, 104
          %s841 = scalar_lea.vmem [#allocation2], %s840
        $region108: #{tpu_custom_call.1} parent=103 // pred_fallthru
          _
      $region104: #{tpu_custom_call.1} parent=5 // pred_fallthru
        _
    $region6: #{tpu_custom_call.1} parent=1 // loop_footer
      %s17 = sadd.s32 1, %s13
    $region7: #{tpu_custom_call.1} parent=1 // loop_footer_branch
      %12 = sbr.rel target = $region3
    $region8: #{tpu_custom_call.1} parent=1 // loop_exit
      _

</llo_original>
